<compile_context>
chip_gen: v5e
topology: v5e:2x2
jax: 0.10.0
libtpu: 0.0.40
codegen_flags: <defaults>
</compile_context>

<pallas_src>
import functools

import jax
import jax.numpy as jnp
from jax.experimental import pallas as pl
from jax.experimental.pallas import tpu as pltpu


def _round_up(x, m):
    return (x + m - 1) // m * m


def _net_kernel(batch_ref, x_ref, w0_ref, w1_ref, wh_ref, b_ref, inv_cnt_ref,
                out_ref, acc_ref, *, out_dim):
    i = pl.program_id(0)
    TN = x_ref.shape[0]          # node tile
    Hp = w0_ref.shape[1]         # padded hidden
    Op = wh_ref.shape[1]         # padded output classes
    BP = acc_ref.shape[0]        # padded number of graphs

    @pl.when(i == 0)
    def _():
        acc_ref[...] = jnp.zeros_like(acc_ref)

    # ---- encoder: 2-layer MLP + ReLU on this node tile ----
    # x arrives as raw f32 (no feature padding); cast to bf16 only for the MXU operand.
    x_bf = x_ref[...].astype(jnp.bfloat16)
    h = jnp.dot(x_bf, w0_ref[...], preferred_element_type=jnp.float32)
    h = jnp.maximum(h + b_ref[0:1, :Hp], 0.0)                    # f32 element-wise (v5e-safe)
    h = jnp.dot(h.astype(jnp.bfloat16), w1_ref[...], preferred_element_type=jnp.float32)
    h = jnp.maximum(h + b_ref[1:2, :Hp], 0.0)

    # ---- segment-sum pooling: transposed one-hot, MXU-native contraction ----
    # batch_ref is a [1, TN] row of graph ids; padded nodes carry -1 and match no graph.
    gids = jax.lax.broadcasted_iota(jnp.int32, (BP, TN), 0)
    onehot = (batch_ref[...] == gids).astype(jnp.bfloat16)       # [BP, TN]
    acc_ref[...] += jnp.dot(onehot, h.astype(jnp.bfloat16),      # [BP, TN] @ [TN, Hp] -> [BP, Hp]
                            preferred_element_type=jnp.float32)

    # ---- finalize on the last node tile: mean pool, fused head linear, log_softmax ----
    @pl.when(i == pl.num_programs(0) - 1)
    def _():
        mean = acc_ref[...] * inv_cnt_ref[...]                   # [BP, Hp] * [BP, 1]
        logits = jnp.dot(mean.astype(jnp.bfloat16), wh_ref[...],
                         preferred_element_type=jnp.float32) + b_ref[2:3, :Op]
        lane = jax.lax.broadcasted_iota(jnp.int32, logits.shape, 1)
        logits = jnp.where(lane < out_dim, logits, -1e30)        # mask padded class lanes
        m = jnp.max(logits, axis=-1, keepdims=True)
        s = logits - m
        lse = jnp.log(jnp.sum(jnp.exp(s), axis=-1, keepdims=True))
        out_ref[...] = s - lse                                   # lane-dense [BP, Op] store


def net_forward(x, batch, num_graphs, params, *, node_tile=512, interpret=False):
    """x: [N, F_in] float32 node features; batch: [N] int32 graph id in [0, num_graphs)."""
    w0, b0, w1, b1, w2, b2, w3, b3 = params
    N, F_in = x.shape
    H = w1.shape[1]
    out_dim = w3.shape[1]

    # Eval-time fusion of the two head Linears (Dropout(0.25) is identity in eval,
    # no nonlinearity between them).
    w_head = w2 @ w3                       # [H, out_dim]
    b_head = b2 @ w3 + b3                  # [1, out_dim]

    # Lane / MXU-friendly padded sizes (features stay unpadded!).
    Hp = _round_up(H, 128)
    Op = _round_up(out_dim, 128)
    BP = _round_up(max(num_graphs, 1), 8)
    Np = _round_up(N, node_tile)
    bw = max(Hp, Op)

    # Node features: raw f32, only row-padded if N is ragged w.r.t. the tile.
    if Np != N:
        x_in = jnp.zeros((Np, F_in), x.dtype).at[:N, :].set(x)
    else:
        x_in = x
    batch_i32 = batch.astype(jnp.int32)
    batch_p = jnp.full((1, Np), -1, jnp.int32).at[0, :N].set(batch_i32)

    # Per-graph inverse counts (mean pooling) computed once on host side.
    counts = jnp.zeros((BP,), jnp.float32).at[batch_i32].add(1.0)
    inv_cnt = (1.0 / jnp.maximum(counts, 1.0)).reshape(BP, 1)

    # Weights: bf16 MXU operands; biases f32 (added to f32 accumulations).
    w0_p = w0.astype(jnp.bfloat16)                                        # [F_in, H] -> pad H
    w0_p = jnp.zeros((F_in, Hp), jnp.bfloat16).at[:, :H].set(w0_p)
    w1_p = jnp.zeros((Hp, Hp), jnp.bfloat16).at[:H, :H].set(w1.astype(jnp.bfloat16))
    wh_p = jnp.zeros((Hp, Op), jnp.bfloat16).at[:H, :out_dim].set(w_head.astype(jnp.bfloat16))
    bias_p = jnp.zeros((3, bw), jnp.float32)
    bias_p = bias_p.at[0, :H].set(b0.reshape(-1))
    bias_p = bias_p.at[1, :H].set(b1.reshape(-1))
    bias_p = bias_p.at[2, :out_dim].set(b_head.reshape(-1))

    grid = (Np // node_tile,)
    kernel = functools.partial(_net_kernel, out_dim=out_dim)

    flops = 2 * Np * (F_in * Hp + Hp * Hp) + 2 * Np * BP * Hp + 2 * BP * Hp * Op
    bytes_accessed = (Np * F_in * 4 + Np * 4
                      + (F_in * Hp + Hp * Hp + Hp * Op) * 2
                      + 3 * bw * 4 + BP * 4 + BP * Op * 4)
    cost = pl.CostEstimate(flops=int(flops), transcendentals=int(BP * Op + BP),
                           bytes_accessed=int(bytes_accessed))

    out_padded = pl.pallas_call(
        kernel,
        out_shape=jax.ShapeDtypeStruct((BP, Op), jnp.float32),
        grid_spec=pltpu.PrefetchScalarGridSpec(
            num_scalar_prefetch=0,
            grid=grid,
            in_specs=[
                pl.BlockSpec((1, node_tile), lambda i: (0, i)),     # batch ids (row), per tile
                pl.BlockSpec((node_tile, F_in), lambda i: (i, 0)),  # node features, per tile (no F pad)
                pl.BlockSpec((F_in, Hp), lambda i: (0, 0)),         # encoder W0 (resident)
                pl.BlockSpec((Hp, Hp), lambda i: (0, 0)),           # encoder W1 (resident)
                pl.BlockSpec((Hp, Op), lambda i: (0, 0)),           # fused head W (resident)
                pl.BlockSpec((3, bw), lambda i: (0, 0)),            # packed biases (resident)
                pl.BlockSpec((BP, 1), lambda i: (0, 0)),            # 1/counts per graph (resident)
            ],
            out_specs=pl.BlockSpec((BP, Op), lambda i: (0, 0)),     # resident, written on last tile
            scratch_shapes=[
                pltpu.VMEM((BP, Hp), jnp.float32),                  # pooled-sum accumulator
            ],
        ),
        compiler_params=pltpu.CompilerParams(
            dimension_semantics=("arbitrary",),                     # node axis = pooling reduction
            vmem_limit_bytes=32 * 1024 * 1024,
        ),
        cost_estimate=cost,
        interpret=interpret,
    )(batch_p, x_in, w0_p, w1_p, wh_p, bias_p, inv_cnt)

    return out_padded[:num_graphs, :out_dim]


def init_params(key, f_in, hiddens, output_dim):
    """Deterministic parameter init. Biases kept 2D [1, out]."""
    dims = [(f_in, hiddens[0]), (hiddens[0], hiddens[1]),
            (hiddens[1], hiddens[1]), (hiddens[1], output_dim)]
    params = []
    keys = jax.random.split(key, len(dims))
    for k, (din, dout) in zip(keys, dims):
        scale = 1.0 / jnp.sqrt(jnp.float32(din))
        w = jax.random.uniform(k, (din, dout), jnp.float32, -scale, scale)
        b = jnp.zeros((1, dout), jnp.float32)
        params.extend([w, b])
    return tuple(params)


def _reference(x, batch, num_graphs, params):
    """Plain-JAX f32 reference of the same forward pass (eval mode)."""
    w0, b0, w1, b1, w2, b2, w3, b3 = params
    h = jnp.maximum(x @ w0 + b0, 0.0)
    h = jnp.maximum(h @ w1 + b1, 0.0)
    onehot = (batch[:, None] == jnp.arange(num_graphs)[None, :]).astype(jnp.float32)
    counts = jnp.maximum(onehot.sum(0), 1.0)
    pooled = (onehot.T @ h) / counts[:, None]
    logits = (pooled @ w2 + b2) @ w3 + b3
    return jax.nn.log_softmax(logits, axis=-1)


if __name__ == "__main__":
    key = jax.random.PRNGKey(0)
    k_x, k_p = jax.random.split(key)

    # Small synthetic graph batch: 1000 nodes (ragged vs. the 512 node tile), 16 input
    # features, 4 graphs with uneven sizes.
    N, F_IN = 1000, 16
    HIDDENS = [32, 32]          # encoder.hiddens; mlp head uses hiddens[-1]
    OUTPUT_DIM = 8
    sizes = [300, 250, 200, 250]
    B = len(sizes)

    x = jax.random.normal(k_x, (N, F_IN), jnp.float32)
    batch = jnp.concatenate([jnp.full((s,), g, jnp.int32) for g, s in enumerate(sizes)])

    params = init_params(k_p, F_IN, HIDDENS, OUTPUT_DIM)

    out = net_forward(x, batch, B, params, node_tile=512)
    out = jax.block_until_ready(out)

    assert out.shape == (B, OUTPUT_DIM)
    # log_softmax rows must sum (in prob space) to ~1
    assert jnp.allclose(jnp.sum(jnp.exp(out), axis=-1), 1.0, atol=1e-4)
    # match the f32 reference within bf16 matmul tolerance
    ref = _reference(x, batch, B, params)
    assert jnp.allclose(out, ref, atol=5e-2), (out, ref)
    print("KERNEL_OK")
</pallas_src>

<mosaic_0001>
module attributes {stable_mosaic.version = 11 : i64} {
  func.func @_net_kernel(%arg0: i32, %arg1: memref<1x512xi32, #tpu.memory_space<vmem>>, %arg2: memref<512x16xf32, #tpu.memory_space<vmem>>, %arg3: memref<16x128xbf16, #tpu.memory_space<vmem>>, %arg4: memref<128x128xbf16, #tpu.memory_space<vmem>>, %arg5: memref<128x128xbf16, #tpu.memory_space<vmem>>, %arg6: memref<3x128xf32, #tpu.memory_space<vmem>>, %arg7: memref<8x1xf32, #tpu.memory_space<vmem>>, %arg8: memref<8x128xf32, #tpu.memory_space<vmem>>, %arg9: memref<8x128xf32, #tpu.memory_space<vmem>>) attributes {dimension_semantics = [#tpu.dimension_semantics<arbitrary>], iteration_bounds = array<i64: 2>, scalar_prefetch = 0 : i64, scratch_operands = 1 : i64, tpu.core_type = #tpu.core_type<tc>, window_params = [{transform_indices = @transform_0, window_bounds = array<i64: 1, 512>}, {transform_indices = @transform_1, window_bounds = array<i64: 512, 16>}, {pipeline_mode = #tpu.pipeline_mode<synchronous>, transform_indices = @transform_2, window_bounds = array<i64: 16, 128>}, {pipeline_mode = #tpu.pipeline_mode<synchronous>, transform_indices = @transform_3, window_bounds = array<i64: 128, 128>}, {pipeline_mode = #tpu.pipeline_mode<synchronous>, transform_indices = @transform_4, window_bounds = array<i64: 128, 128>}, {pipeline_mode = #tpu.pipeline_mode<synchronous>, transform_indices = @transform_5, window_bounds = array<i64: 3, 128>}, {pipeline_mode = #tpu.pipeline_mode<synchronous>, transform_indices = @transform_6, window_bounds = array<i64: 8, 1>}, {pipeline_mode = #tpu.pipeline_mode<synchronous>, transform_indices = @transform_7, window_bounds = array<i64: 8, 128>}]} {
    %c0_i32 = arith.constant 0 : i32
    %0 = arith.cmpi eq, %arg0, %c0_i32 : i32
    %1 = arith.extui %0 : i1 to i32
    %c0_i32_0 = arith.constant 0 : i32
    %2 = arith.cmpi ne, %1, %c0_i32_0 : i32
    scf.if %2 {
      %cst_20 = arith.constant 0.000000e+00 : f32
      %35 = vector.broadcast %cst_20 : f32 to vector<8x128xf32>
      %c0_21 = arith.constant 0 : index
      %c0_22 = arith.constant 0 : index
      %36 = vector.load %arg9[%c0_21, %c0_22] : memref<8x128xf32, #tpu.memory_space<vmem>>, vector<8x128xf32>
      tpu.vector_store %arg9[%c0_21, %c0_22], %35 {strides = array<i32>} : memref<8x128xf32, #tpu.memory_space<vmem>>, vector<8x128xf32>,
    } else {
    }
    %c0 = arith.constant 0 : index
    %c0_1 = arith.constant 0 : index
    %3 = vector.load %arg2[%c0, %c0_1] : memref<512x16xf32, #tpu.memory_space<vmem>>, vector<512x16xf32>
    %4 = arith.truncf %3 : vector<512x16xf32> to vector<512x16xbf16>
    %c0_2 = arith.constant 0 : index
    %c0_3 = arith.constant 0 : index
    %5 = vector.load %arg3[%c0_2, %c0_3] : memref<16x128xbf16, #tpu.memory_space<vmem>>, vector<16x128xbf16>
    %cst = arith.constant dense<0.000000e+00> : vector<512x128xf32>
    %6 = tpu.matmul %4, %5, %cst {dimension_numbers = #tpu.dot_dimension_numbers<[1], [0], [0], [1], [0, 0, 1, 1], [], []>} : vector<512x16xbf16>, vector<16x128xbf16>, vector<512x128xf32> -> vector<512x128xf32>
    %c0_4 = arith.constant 0 : index
    %c0_5 = arith.constant 0 : index
    %7 = vector.load %arg6[%c0_4, %c0_5] : memref<3x128xf32, #tpu.memory_space<vmem>>, vector<1x128xf32>
    %8 = vector.broadcast %7 : vector<1x128xf32> to vector<512x128xf32>
    %9 = arith.addf %6, %8 : vector<512x128xf32>
    %cst_6 = arith.constant 0.000000e+00 : f32
    %10 = vector.broadcast %cst_6 : f32 to vector<512x128xf32>
    %11 = arith.maximumf %9, %10 : vector<512x128xf32>
    %12 = arith.truncf %11 : vector<512x128xf32> to vector<512x128xbf16>
    %c0_7 = arith.constant 0 : index
    %c0_8 = arith.constant 0 : index
    %13 = vector.load %arg4[%c0_7, %c0_8] : memref<128x128xbf16, #tpu.memory_space<vmem>>, vector<128x128xbf16>
    %cst_9 = arith.constant dense<0.000000e+00> : vector<512x128xf32>
    %14 = tpu.matmul %12, %13, %cst_9 {dimension_numbers = #tpu.dot_dimension_numbers<[1], [0], [0], [1], [0, 0, 1, 1], [], []>} : vector<512x128xbf16>, vector<128x128xbf16>, vector<512x128xf32> -> vector<512x128xf32>
    %c1 = arith.constant 1 : index
    %c0_10 = arith.constant 0 : index
    %15 = vector.load %arg6[%c1, %c0_10] : memref<3x128xf32, #tpu.memory_space<vmem>>, vector<1x128xf32>
    %16 = vector.broadcast %15 : vector<1x128xf32> to vector<512x128xf32>
    %17 = arith.addf %14, %16 : vector<512x128xf32>
    %cst_11 = arith.constant 0.000000e+00 : f32
    %18 = vector.broadcast %cst_11 : f32 to vector<512x128xf32>
    %19 = arith.maximumf %17, %18 : vector<512x128xf32>
    %20 = tpu.iota {dimensions = array<i32: 0>} : vector<8x512xi32>
    %c0_12 = arith.constant 0 : index
    %c0_13 = arith.constant 0 : index
    %21 = vector.load %arg1[%c0_12, %c0_13] : memref<1x512xi32, #tpu.memory_space<vmem>>, vector<1x512xi32>
    %22 = vector.broadcast %21 : vector<1x512xi32> to vector<8x512xi32>
    %23 = arith.cmpi eq, %22, %20 : vector<8x512xi32>
    %24 = arith.extui %23 : vector<8x512xi1> to vector<8x512xi32>
    %25 = arith.sitofp %24 : vector<8x512xi32> to vector<8x512xf32>
    %26 = arith.truncf %25 : vector<8x512xf32> to vector<8x512xbf16>
    %c0_14 = arith.constant 0 : index
    %c0_15 = arith.constant 0 : index
    %27 = vector.load %arg9[%c0_14, %c0_15] : memref<8x128xf32, #tpu.memory_space<vmem>>, vector<8x128xf32>
    %28 = arith.truncf %19 : vector<512x128xf32> to vector<512x128xbf16>
    %cst_16 = arith.constant dense<0.000000e+00> : vector<8x128xf32>
    %29 = tpu.matmul %26, %28, %cst_16 {dimension_numbers = #tpu.dot_dimension_numbers<[1], [0], [0], [1], [0, 0, 1, 1], [], []>} : vector<8x512xbf16>, vector<512x128xbf16>, vector<8x128xf32> -> vector<8x128xf32>
    %30 = arith.addf %27, %29 : vector<8x128xf32>
    %c0_17 = arith.constant 0 : index
    %c0_18 = arith.constant 0 : index
    %31 = vector.load %arg9[%c0_17, %c0_18] : memref<8x128xf32, #tpu.memory_space<vmem>>, vector<8x128xf32>
    tpu.vector_store %arg9[%c0_17, %c0_18], %30 {strides = array<i32>} : memref<8x128xf32, #tpu.memory_space<vmem>>, vector<8x128xf32>,
    %c1_i32 = arith.constant 1 : i32
    %32 = arith.cmpi eq, %arg0, %c1_i32 : i32
    %33 = arith.extui %32 : i1 to i32
    %c0_i32_19 = arith.constant 0 : i32
    %34 = arith.cmpi ne, %33, %c0_i32_19 : i32
    scf.if %34 {
      %c0_20 = arith.constant 0 : index
      %c0_21 = arith.constant 0 : index
      %35 = vector.load %arg9[%c0_20, %c0_21] : memref<8x128xf32, #tpu.memory_space<vmem>>, vector<8x128xf32>
      %c0_22 = arith.constant 0 : index
      %c0_23 = arith.constant 0 : index
      %36 = vector.load %arg7[%c0_22, %c0_23] : memref<8x1xf32, #tpu.memory_space<vmem>>, vector<8x1xf32>
      %37 = vector.broadcast %36 : vector<8x1xf32> to vector<8x128xf32>
      %38 = arith.mulf %35, %37 : vector<8x128xf32>
      %39 = arith.truncf %38 : vector<8x128xf32> to vector<8x128xbf16>
      %c0_24 = arith.constant 0 : index
      %c0_25 = arith.constant 0 : index
      %40 = vector.load %arg5[%c0_24, %c0_25] : memref<128x128xbf16, #tpu.memory_space<vmem>>, vector<128x128xbf16>
      %cst_26 = arith.constant dense<0.000000e+00> : vector<8x128xf32>
      %41 = tpu.matmul %39, %40, %cst_26 {dimension_numbers = #tpu.dot_dimension_numbers<[1], [0], [0], [1], [0, 0, 1, 1], [], []>} : vector<8x128xbf16>, vector<128x128xbf16>, vector<8x128xf32> -> vector<8x128xf32>
      %c2 = arith.constant 2 : index
      %c0_27 = arith.constant 0 : index
      %42 = vector.load %arg6[%c2, %c0_27] : memref<3x128xf32, #tpu.memory_space<vmem>>, vector<1x128xf32>
      %43 = vector.broadcast %42 : vector<1x128xf32> to vector<8x128xf32>
      %44 = arith.addf %41, %43 : vector<8x128xf32>
      %45 = tpu.iota {dimensions = array<i32: 1>} : vector<8x128xi32>
      %c8_i32 = arith.constant 8 : i32
      %46 = vector.broadcast %c8_i32 : i32 to vector<8x128xi32>
      %47 = arith.cmpi slt, %45, %46 : vector<8x128xi32>
      %cst_28 = arith.constant -1.000000e+30 : f32
      %48 = vector.broadcast %cst_28 : f32 to vector<8x128xf32>
      %49 = arith.select %47, %44, %48 : vector<8x128xi1>, vector<8x128xf32>
      %cst_29 = arith.constant dense<0xFF800000> : vector<8xf32>
      %50 = vector.multi_reduction <maximumf>, %49, %cst_29 [1] : vector<8x128xf32> to vector<8xf32>
      %51 = vector.shape_cast %50 : vector<8xf32> to vector<8x1xf32>
      %52 = vector.broadcast %51 : vector<8x1xf32> to vector<8x128xf32>
      %53 = arith.subf %49, %52 : vector<8x128xf32>
      %54 = math.exp %53 : vector<8x128xf32>
      %cst_30 = arith.constant dense<0.000000e+00> : vector<8xf32>
      %55 = vector.multi_reduction <add>, %54, %cst_30 [1] : vector<8x128xf32> to vector<8xf32>
      %56 = vector.shape_cast %55 : vector<8xf32> to vector<8x1xf32>
      %57 = math.log %56 : vector<8x1xf32>
      %58 = vector.broadcast %57 : vector<8x1xf32> to vector<8x128xf32>
      %59 = arith.subf %53, %58 : vector<8x128xf32>
      %c0_31 = arith.constant 0 : index
      %c0_32 = arith.constant 0 : index
      %60 = vector.load %arg8[%c0_31, %c0_32] : memref<8x128xf32, #tpu.memory_space<vmem>>, vector<8x128xf32>
      tpu.vector_store %arg8[%c0_31, %c0_32], %59 {strides = array<i32>} : memref<8x128xf32, #tpu.memory_space<vmem>>, vector<8x128xf32>,
    } else {
    }
    return
  }
  func.func @transform_0(%arg0: i32) -> (i32, i32) {
    %c0_i32 = arith.constant 0 : i32
    %c0_i32_0 = arith.constant 0 : i32
    return %c0_i32, %arg0 : i32, i32
  }
  func.func @transform_1(%arg0: i32) -> (i32, i32) {
    %c0_i32 = arith.constant 0 : i32
    %c0_i32_0 = arith.constant 0 : i32
    return %arg0, %c0_i32 : i32, i32
  }
  func.func @transform_2(%arg0: i32) -> (i32, i32) {
    %c0_i32 = arith.constant 0 : i32
    %c0_i32_0 = arith.constant 0 : i32
    %c0_i32_1 = arith.constant 0 : i32
    return %c0_i32, %c0_i32_0 : i32, i32
  }
  func.func @transform_3(%arg0: i32) -> (i32, i32) {
    %c0_i32 = arith.constant 0 : i32
    %c0_i32_0 = arith.constant 0 : i32
    %c0_i32_1 = arith.constant 0 : i32
    return %c0_i32, %c0_i32_0 : i32, i32
  }
  func.func @transform_4(%arg0: i32) -> (i32, i32) {
    %c0_i32 = arith.constant 0 : i32
    %c0_i32_0 = arith.constant 0 : i32
    %c0_i32_1 = arith.constant 0 : i32
    return %c0_i32, %c0_i32_0 : i32, i32
  }
  func.func @transform_5(%arg0: i32) -> (i32, i32) {
    %c0_i32 = arith.constant 0 : i32
    %c0_i32_0 = arith.constant 0 : i32
    %c0_i32_1 = arith.constant 0 : i32
    return %c0_i32, %c0_i32_0 : i32, i32
  }
  func.func @transform_6(%arg0: i32) -> (i32, i32) {
    %c0_i32 = arith.constant 0 : i32
    %c0_i32_0 = arith.constant 0 : i32
    %c0_i32_1 = arith.constant 0 : i32
    return %c0_i32, %c0_i32_0 : i32, i32
  }
  func.func @transform_7(%arg0: i32) -> (i32, i32) {
    %c0_i32 = arith.constant 0 : i32
    %c0_i32_0 = arith.constant 0 : i32
    %c0_i32_1 = arith.constant 0 : i32
    return %c0_i32, %c0_i32_0 : i32, i32
  }
}

</mosaic_0001>

<llo_original>
// kernel: tpu_custom_call.1
$region0: #{tpu_custom_call.1}
  #allocation0 [shape = 'u32[]', space=smem, size = 0x4, offset = 0x4, fixed_abs, tag = 'smem constant byte address 0x4 - core index']
  #allocation1 [shape = 'u32[72,128]{1,0:T(1,128)}', space=vmem, size = 0x9000, scoped, tag = 'internal scratch']
  #allocation2 [shape = 'f32[8,128]{1,0:T(8,128)}', space=vmem, size = 0x1000, scoped, tag = 'scratch operand']
  %s0 = inlined_call_operand.vmem [shape: s32[1,1024], index: 0, kind: input, shape index: {}]
  %s1 = inlined_call_operand.vmem [shape: f32[1024,16], index: 1, kind: input, shape index: {}]
  %s2 = inlined_call_operand.vmem [shape: bf16[16,128], index: 2, kind: input, shape index: {}]
  %s3 = inlined_call_operand.vmem [shape: bf16[128,128], index: 3, kind: input, shape index: {}]
  %s4 = inlined_call_operand.vmem [shape: bf16[128,128], index: 4, kind: input, shape index: {}]
  %s5 = inlined_call_operand.vmem [shape: f32[3,128], index: 5, kind: input, shape index: {}]
  %s6 = inlined_call_operand.vmem [shape: f32[8,1], index: 6, kind: input, shape index: {}]
  %s7 = inlined_call_operand.hbm [shape: f32[8,128], index: 7, kind: output, shape index: {}]
  %s8 = sld [smem:[#allocation0]]
  $region69: #{tpu_custom_call.1} parent=0
    _
  %s10 = ssub.s32 1, %s8
  %s11 = scalar_select 0, %s10, %s8
  $region1: #{tpu_custom_call.1} parent=0
    #allocation3 [shape = 'u8[4096]{0}', space=vmem, size = 0x1000, scoped, tag = 'output window, operand 0, single buffered']
    #allocation4 [shape = 's32[2]{0}', space=sflag, size = 0x8, scoped, tag = 'scoped memory for tpu_custom_call.1']
    %12 = vsyncpa [#allocation4], 0
    loop: start=0, step=1, limit=4
    $region2: #{tpu_custom_call.1} parent=1 // loop_pre_header
      _
    $region3: #{tpu_custom_call.1} parent=1 // loop_header
      %s14 = sphi 0, %s18
      %p15 = scmp.ge.s32.totalorder %s14, 4
      %s24 = sphi 0, %s26
      %s27 = sphi 0, %s24
      %s28 = sphi 0, %s27
      %s44 = sphi 0, %s28
      %s50 = sphi 0, %s52
      %s53 = sphi 0, %s50
      %s54 = sphi 0, %s53
      %s70 = sphi 0, %s54
      %s74 = sphi 0, %s74
      %s76 = sphi 0, %s74
      %s77 = sphi 0, %s76
      %s91 = sphi 0, %s77
      %s95 = sphi 0, %s95
      %s97 = sphi 0, %s95
      %s98 = sphi 0, %s97
      %s112 = sphi 0, %s98
      %s116 = sphi 0, %s116
      %s118 = sphi 0, %s116
      %s119 = sphi 0, %s118
      %s133 = sphi 0, %s119
      %s137 = sphi 0, %s137
      %s139 = sphi 0, %s137
      %s140 = sphi 0, %s139
      %s154 = sphi 0, %s140
      %s158 = sphi 0, %s158
      %s160 = sphi 0, %s158
      %s161 = sphi 0, %s160
      %s175 = sphi 0, %s161
      %s179 = sphi 0, %s179
      %s181 = sphi 0, %s179
      %s182 = sphi 0, %s181
      %s196 = sphi 0, %s182
    $region4: #{tpu_custom_call.1} parent=1 // loop_header_branch
      %17 = sbr.rel (%p15) target = $region8
    $region5: #{tpu_custom_call.1} parent=1 // loop_body
      %s19 = ssub.s32 %s14, 1
      %s20 = ssub.s32 %s14, 2
      %s21 = sadd.s32 %s14, 1
      %s22 = ssub.s32 %s14, %s21
      %p23 = scmp.eq.s32.totalorder %s22, 0
      %s25 = sadd.s32 %s24, 1
      %s26 = scalar_select %p23, %s24, %s25
      %p29 = pneg %p23
      %p30 = scmp.eq.s32.totalorder %s14, 1
      %p31 = por %p29, %p30
      %p32 = scmp.ne.s32.totalorder %s24, %s27
      %p33 = scmp.eq.s32.totalorder %s14, 0
      %p34 = por %p32, %p33
      %p35 = scmp.ne.s32.totalorder %s24, %s27
      %p36 = scmp.eq.s32.totalorder %s19, 1
      %p37 = por %p35, %p36
      %p38 = scmp.ne.s32.totalorder %s27, %s28
      %p39 = scmp.eq.s32.totalorder %s19, 0
      %p40 = por %p38, %p39
      %p41 = scmp.ne.s32.totalorder %s27, %s28
      %p42 = scmp.eq.s32.totalorder %s20, 1
      %p43 = por %p41, %p42
      %p45 = scmp.ne.s32.totalorder %s28, %s44
      %p46 = scmp.eq.s32.totalorder %s20, 0
      %p47 = por %p45, %p46
      %s48 = ssub.s32 %s14, %s21
      %p49 = scmp.eq.s32.totalorder %s48, 0
      %s51 = sadd.s32 %s50, 1
      %s52 = scalar_select %p49, %s50, %s51
      %p55 = pneg %p49
      %p56 = scmp.eq.s32.totalorder %s14, 1
      %p57 = por %p55, %p56
      %p58 = scmp.ne.s32.totalorder %s50, %s53
      %p59 = scmp.eq.s32.totalorder %s14, 0
      %p60 = por %p58, %p59
      %p61 = scmp.ne.s32.totalorder %s50, %s53
      %p62 = scmp.eq.s32.totalorder %s19, 1
      %p63 = por %p61, %p62
      %p64 = scmp.ne.s32.totalorder %s53, %s54
      %p65 = scmp.eq.s32.totalorder %s19, 0
      %p66 = por %p64, %p65
      %p67 = scmp.ne.s32.totalorder %s53, %s54
      %p68 = scmp.eq.s32.totalorder %s20, 1
      %p69 = por %p67, %p68
      %p71 = scmp.ne.s32.totalorder %s54, %s70
      %p72 = scmp.eq.s32.totalorder %s20, 0
      %p73 = por %p71, %p72
      %s75 = sadd.s32 %s74, 1
      %p78 = scmp.eq.s32.totalorder %s14, 1
      %p79 = scmp.ne.s32.totalorder %s74, %s76
      %p80 = scmp.eq.s32.totalorder %s14, 0
      %p81 = por %p79, %p80
      %p82 = scmp.ne.s32.totalorder %s74, %s76
      %p83 = scmp.eq.s32.totalorder %s19, 1
      %p84 = por %p82, %p83
      %p85 = scmp.ne.s32.totalorder %s76, %s77
      %p86 = scmp.eq.s32.totalorder %s19, 0
      %p87 = por %p85, %p86
      %p88 = scmp.ne.s32.totalorder %s76, %s77
      %p89 = scmp.eq.s32.totalorder %s20, 1
      %p90 = por %p88, %p89
      %p92 = scmp.ne.s32.totalorder %s77, %s91
      %p93 = scmp.eq.s32.totalorder %s20, 0
      %p94 = por %p92, %p93
      %s96 = sadd.s32 %s95, 1
      %p99 = scmp.eq.s32.totalorder %s14, 1
      %p100 = scmp.ne.s32.totalorder %s95, %s97
      %p101 = scmp.eq.s32.totalorder %s14, 0
      %p102 = por %p100, %p101
      %p103 = scmp.ne.s32.totalorder %s95, %s97
      %p104 = scmp.eq.s32.totalorder %s19, 1
      %p105 = por %p103, %p104
      %p106 = scmp.ne.s32.totalorder %s97, %s98
      %p107 = scmp.eq.s32.totalorder %s19, 0
      %p108 = por %p106, %p107
      %p109 = scmp.ne.s32.totalorder %s97, %s98
      %p110 = scmp.eq.s32.totalorder %s20, 1
      %p111 = por %p109, %p110
      %p113 = scmp.ne.s32.totalorder %s98, %s112
      %p114 = scmp.eq.s32.totalorder %s20, 0
      %p115 = por %p113, %p114
      %s117 = sadd.s32 %s116, 1
      %p120 = scmp.eq.s32.totalorder %s14, 1
      %p121 = scmp.ne.s32.totalorder %s116, %s118
      %p122 = scmp.eq.s32.totalorder %s14, 0
      %p123 = por %p121, %p122
      %p124 = scmp.ne.s32.totalorder %s116, %s118
      %p125 = scmp.eq.s32.totalorder %s19, 1
      %p126 = por %p124, %p125
      %p127 = scmp.ne.s32.totalorder %s118, %s119
      %p128 = scmp.eq.s32.totalorder %s19, 0
      %p129 = por %p127, %p128
      %p130 = scmp.ne.s32.totalorder %s118, %s119
      %p131 = scmp.eq.s32.totalorder %s20, 1
      %p132 = por %p130, %p131
      %p134 = scmp.ne.s32.totalorder %s119, %s133
      %p135 = scmp.eq.s32.totalorder %s20, 0
      %p136 = por %p134, %p135
      %s138 = sadd.s32 %s137, 1
      %p141 = scmp.eq.s32.totalorder %s14, 1
      %p142 = scmp.ne.s32.totalorder %s137, %s139
      %p143 = scmp.eq.s32.totalorder %s14, 0
      %p144 = por %p142, %p143
      %p145 = scmp.ne.s32.totalorder %s137, %s139
      %p146 = scmp.eq.s32.totalorder %s19, 1
      %p147 = por %p145, %p146
      %p148 = scmp.ne.s32.totalorder %s139, %s140
      %p149 = scmp.eq.s32.totalorder %s19, 0
      %p150 = por %p148, %p149
      %p151 = scmp.ne.s32.totalorder %s139, %s140
      %p152 = scmp.eq.s32.totalorder %s20, 1
      %p153 = por %p151, %p152
      %p155 = scmp.ne.s32.totalorder %s140, %s154
      %p156 = scmp.eq.s32.totalorder %s20, 0
      %p157 = por %p155, %p156
      %s159 = sadd.s32 %s158, 1
      %p162 = scmp.eq.s32.totalorder %s14, 1
      %p163 = scmp.ne.s32.totalorder %s158, %s160
      %p164 = scmp.eq.s32.totalorder %s14, 0
      %p165 = por %p163, %p164
      %p166 = scmp.ne.s32.totalorder %s158, %s160
      %p167 = scmp.eq.s32.totalorder %s19, 1
      %p168 = por %p166, %p167
      %p169 = scmp.ne.s32.totalorder %s160, %s161
      %p170 = scmp.eq.s32.totalorder %s19, 0
      %p171 = por %p169, %p170
      %p172 = scmp.ne.s32.totalorder %s160, %s161
      %p173 = scmp.eq.s32.totalorder %s20, 1
      %p174 = por %p172, %p173
      %p176 = scmp.ne.s32.totalorder %s161, %s175
      %p177 = scmp.eq.s32.totalorder %s20, 0
      %p178 = por %p176, %p177
      %s180 = sadd.s32 %s179, 1
      %p183 = scmp.eq.s32.totalorder %s14, 1
      %p184 = scmp.ne.s32.totalorder %s179, %s181
      %p185 = scmp.eq.s32.totalorder %s14, 0
      %p186 = por %p184, %p185
      %p187 = scmp.ne.s32.totalorder %s179, %s181
      %p188 = scmp.eq.s32.totalorder %s19, 1
      %p189 = por %p187, %p188
      %p190 = scmp.ne.s32.totalorder %s181, %s182
      %p191 = scmp.eq.s32.totalorder %s19, 0
      %p192 = por %p190, %p191
      %p193 = scmp.ne.s32.totalorder %s181, %s182
      %p194 = scmp.eq.s32.totalorder %s20, 1
      %p195 = por %p193, %p194
      %p197 = scmp.ne.s32.totalorder %s182, %s196
      %p198 = scmp.eq.s32.totalorder %s20, 0
      %p199 = por %p197, %p198
      %p200 = scmp.le.s32.totalorder 1, %s14
      %p201 = scmp.lt.s32.totalorder %s14, 3
      %p202 = pnand %p200, %p201
      %p203 = pneg %p202
      // Predicated region
      $region9: #{tpu_custom_call.1} parent=5 // pred_check
        _
      $region10: #{tpu_custom_call.1} parent=5 // pred_check_branch
        %205 = sbr.rel (%p202) target = $region12
      $region11: #{tpu_custom_call.1} parent=5 // pred_region
        %s206 = ssub.s32 %s14, 1
        // Predicated region
        $region13: #{tpu_custom_call.1} parent=11 // pred_check
          %p207 = pneg %p87
        $region14: #{tpu_custom_call.1} parent=11 // pred_check_branch
          %209 = sbr.rel (%p207) target = $region16
        $region15: #{tpu_custom_call.1} parent=11 // pred_region
          _
        $region16: #{tpu_custom_call.1} parent=11 // pred_fallthru
          _
        // Predicated region
        $region17: #{tpu_custom_call.1} parent=11 // pred_check
          %p210 = pneg %p108
        $region18: #{tpu_custom_call.1} parent=11 // pred_check_branch
          %212 = sbr.rel (%p210) target = $region20
        $region19: #{tpu_custom_call.1} parent=11 // pred_region
          _
        $region20: #{tpu_custom_call.1} parent=11 // pred_fallthru
          _
        // Predicated region
        $region21: #{tpu_custom_call.1} parent=11 // pred_check
          %p213 = pneg %p129
        $region22: #{tpu_custom_call.1} parent=11 // pred_check_branch
          %215 = sbr.rel (%p213) target = $region24
        $region23: #{tpu_custom_call.1} parent=11 // pred_region
          _
        $region24: #{tpu_custom_call.1} parent=11 // pred_fallthru
          _
        // Predicated region
        $region25: #{tpu_custom_call.1} parent=11 // pred_check
          %p216 = pneg %p150
        $region26: #{tpu_custom_call.1} parent=11 // pred_check_branch
          %218 = sbr.rel (%p216) target = $region28
        $region27: #{tpu_custom_call.1} parent=11 // pred_region
          _
        $region28: #{tpu_custom_call.1} parent=11 // pred_fallthru
          _
        // Predicated region
        $region29: #{tpu_custom_call.1} parent=11 // pred_check
          %p219 = pneg %p171
        $region30: #{tpu_custom_call.1} parent=11 // pred_check_branch
          %221 = sbr.rel (%p219) target = $region32
        $region31: #{tpu_custom_call.1} parent=11 // pred_region
          _
        $region32: #{tpu_custom_call.1} parent=11 // pred_fallthru
          _
      $region12: #{tpu_custom_call.1} parent=5 // pred_fallthru
        _
      %p222 = scmp.lt.s32.totalorder %s14, 2
      // Predicated region
      $region33: #{tpu_custom_call.1} parent=5 // pred_check
        %p223 = pneg %p222
      $region34: #{tpu_custom_call.1} parent=5 // pred_check_branch
        %225 = sbr.rel (%p223) target = $region36
      $region35: #{tpu_custom_call.1} parent=5 // pred_region
        // Predicated region
        $region37: #{tpu_custom_call.1} parent=35 // pred_check
          %p226 = pneg %p34
        $region38: #{tpu_custom_call.1} parent=35 // pred_check_branch
          %228 = sbr.rel (%p226) target = $region40
        $region39: #{tpu_custom_call.1} parent=35 // pred_region
          %s229 = smul.u32 4, %s14
          %p230 = scmp.lt.s32.totalorder %s229, 7
          %s231 = scalar_select %p230, %s229, 7
          %s232 = scalar_lea.vmem %s0, %s231
          %s233 = smul.u32 4, %s14
        $region40: #{tpu_custom_call.1} parent=35 // pred_fallthru
          _
        // Predicated region
        $region41: #{tpu_custom_call.1} parent=35 // pred_check
          %p234 = pneg %p60
        $region42: #{tpu_custom_call.1} parent=35 // pred_check_branch
          %236 = sbr.rel (%p234) target = $region44
        $region43: #{tpu_custom_call.1} parent=35 // pred_region
          %s237 = smul.u32 64, %s14
          %p238 = scmp.lt.s32.totalorder %s237, 127
          %s239 = scalar_select %p238, %s237, 127
          %s240 = smul.addr %s239, 8
          %s241 = scalar_lea.vmem %s1, %s240
          %s242 = smul.u32 64, %s14
        $region44: #{tpu_custom_call.1} parent=35 // pred_fallthru
          _
      $region36: #{tpu_custom_call.1} parent=5 // pred_fallthru
        _
      %p243 = scmp.le.s32.totalorder 1, %s14
      %p244 = scmp.lt.s32.totalorder %s14, 3
      %p245 = pnand %p243, %p244
      %p246 = pneg %p245
      // Predicated region
      $region45: #{tpu_custom_call.1} parent=5 // pred_check
        _
      $region46: #{tpu_custom_call.1} parent=5 // pred_check_branch
        %248 = sbr.rel (%p245) target = $region48
      $region47: #{tpu_custom_call.1} parent=5 // pred_region
        %s249 = ssub.s32 %s14, 1
        %s250 = smul.u32 4, %s19
        %p251 = scmp.lt.s32.totalorder %s250, 7
        %s252 = scalar_select %p251, %s250, 7
        %s253 = scalar_lea.vmem %s0, %s252
        %p254 = pneg %p40
        %p255 = pneg %p37
        %s256 = smul.u32 64, %s19
        %p257 = scmp.lt.s32.totalorder %s256, 127
        %s258 = scalar_select %p257, %s256, 127
        %s259 = smul.addr %s258, 8
        %s260 = scalar_lea.vmem %s1, %s259
        %p261 = pneg %p66
        %p262 = pneg %p63
        %p263 = pneg %p87
        %p264 = pneg %p84
        %p265 = pneg %p108
        %p266 = pneg %p105
        %p267 = pneg %p129
        %p268 = pneg %p126
        %p269 = pneg %p150
        %p270 = pneg %p147
        %p271 = pneg %p171
        %p272 = pneg %p168
        %p273 = pneg %p192
        %p274 = pneg %p189
        %s275 = smul.u32 4, %s19
        %p276 = scmp.lt.s32.totalorder %s275, 7
        %s277 = scalar_select %p276, %s275, 7
        %s278 = scalar_lea.vmem %s0, %s277
        %s279 = smul.u32 4, %s19
        %s280 = smul.u32 64, %s19
        %p281 = scmp.lt.s32.totalorder %s280, 127
        %s282 = scalar_select %p281, %s280, 127
        %s283 = smul.addr %s282, 8
        %s284 = scalar_lea.vmem %s1, %s283
        %s285 = smul.u32 64, %s19
        %p287 = scmp.eq.s32.totalorder %s19, 0
        // Predicated region
        $region49: #{tpu_custom_call.1} parent=47 // pred_check
          %p288 = pneg %p287
        $region50: #{tpu_custom_call.1} parent=47 // pred_check_branch
          %290 = sbr.rel (%p288) target = $region52
        $region51: #{tpu_custom_call.1} parent=47 // pred_region
          %291 = vst [vmem:[#allocation2] sm:$0xff] 0.0
        $region52: #{tpu_custom_call.1} parent=47 // pred_fallthru
          _
        %v292 = vld [vmem:[%s284] sm:$0xff]
        %v293 = vld [vmem:[%s284 + $0x8] sm:$0xff]
        %v294 = vld [vmem:[%s284 + $0x10] sm:$0xff]
        %v295 = vld [vmem:[%s284 + $0x18] sm:$0xff]
        %v296 = vld [vmem:[%s284 + $0x20] sm:$0xff]
        %v297 = vld [vmem:[%s284 + $0x28] sm:$0xff]
        %v298 = vld [vmem:[%s284 + $0x30] sm:$0xff]
        %v299 = vld [vmem:[%s284 + $0x38] sm:$0xff]
        %v300 = vld [vmem:[%s284 + $0x40] sm:$0xff]
        %v301 = vld [vmem:[%s284 + $0x48] sm:$0xff]
        %v302 = vld [vmem:[%s284 + $0x50] sm:$0xff]
        %v303 = vld [vmem:[%s284 + $0x58] sm:$0xff]
        %v304 = vld [vmem:[%s284 + $0x60] sm:$0xff]
        %v305 = vld [vmem:[%s284 + $0x68] sm:$0xff]
        %v306 = vld [vmem:[%s284 + $0x70] sm:$0xff]
        %v307 = vld [vmem:[%s284 + $0x78] sm:$0xff]
        %v308 = vld [vmem:[%s284 + $0x80] sm:$0xff]
        %v309 = vld [vmem:[%s284 + $0x88] sm:$0xff]
        %v310 = vld [vmem:[%s284 + $0x90] sm:$0xff]
        %v311 = vld [vmem:[%s284 + $0x98] sm:$0xff]
        %v312 = vld [vmem:[%s284 + $0xa0] sm:$0xff]
        %v313 = vld [vmem:[%s284 + $0xa8] sm:$0xff]
        %v314 = vld [vmem:[%s284 + $0xb0] sm:$0xff]
        %v315 = vld [vmem:[%s284 + $0xb8] sm:$0xff]
        %v316 = vld [vmem:[%s284 + $0xc0] sm:$0xff]
        %v317 = vld [vmem:[%s284 + $0xc8] sm:$0xff]
        %v318 = vld [vmem:[%s284 + $0xd0] sm:$0xff]
        %v319 = vld [vmem:[%s284 + $0xd8] sm:$0xff]
        %v320 = vld [vmem:[%s284 + $0xe0] sm:$0xff]
        %v321 = vld [vmem:[%s284 + $0xe8] sm:$0xff]
        %v322 = vld [vmem:[%s284 + $0xf0] sm:$0xff]
        %v323 = vld [vmem:[%s284 + $0xf8] sm:$0xff]
        %v324 = vld [vmem:[%s284 + $0x100] sm:$0xff]
        %v325 = vld [vmem:[%s284 + $0x108] sm:$0xff]
        %v326 = vld [vmem:[%s284 + $0x110] sm:$0xff]
        %v327 = vld [vmem:[%s284 + $0x118] sm:$0xff]
        %v328 = vld [vmem:[%s284 + $0x120] sm:$0xff]
        %v329 = vld [vmem:[%s284 + $0x128] sm:$0xff]
        %v330 = vld [vmem:[%s284 + $0x130] sm:$0xff]
        %v331 = vld [vmem:[%s284 + $0x138] sm:$0xff]
        %v332 = vld [vmem:[%s284 + $0x140] sm:$0xff]
        %v333 = vld [vmem:[%s284 + $0x148] sm:$0xff]
        %v334 = vld [vmem:[%s284 + $0x150] sm:$0xff]
        %v335 = vld [vmem:[%s284 + $0x158] sm:$0xff]
        %v336 = vld [vmem:[%s284 + $0x160] sm:$0xff]
        %v337 = vld [vmem:[%s284 + $0x168] sm:$0xff]
        %v338 = vld [vmem:[%s284 + $0x170] sm:$0xff]
        %v339 = vld [vmem:[%s284 + $0x178] sm:$0xff]
        %v340 = vld [vmem:[%s284 + $0x180] sm:$0xff]
        %v341 = vld [vmem:[%s284 + $0x188] sm:$0xff]
        %v342 = vld [vmem:[%s284 + $0x190] sm:$0xff]
        %v343 = vld [vmem:[%s284 + $0x198] sm:$0xff]
        %v344 = vld [vmem:[%s284 + $0x1a0] sm:$0xff]
        %v345 = vld [vmem:[%s284 + $0x1a8] sm:$0xff]
        %v346 = vld [vmem:[%s284 + $0x1b0] sm:$0xff]
        %v347 = vld [vmem:[%s284 + $0x1b8] sm:$0xff]
        %v348 = vld [vmem:[%s284 + $0x1c0] sm:$0xff]
        %v349 = vld [vmem:[%s284 + $0x1c8] sm:$0xff]
        %v350 = vld [vmem:[%s284 + $0x1d0] sm:$0xff]
        %v351 = vld [vmem:[%s284 + $0x1d8] sm:$0xff]
        %v352 = vld [vmem:[%s284 + $0x1e0] sm:$0xff]
        %v353 = vld [vmem:[%s284 + $0x1e8] sm:$0xff]
        %v354 = vld [vmem:[%s284 + $0x1f0] sm:$0xff]
        %v355 = vld [vmem:[%s284 + $0x1f8] sm:$0xff]
        %v356 = vpack.c.bf16 %v293, %v292
        %v357 = vpack.c.bf16 %v295, %v294
        %v358 = vpack.c.bf16 %v297, %v296
        %v359 = vpack.c.bf16 %v299, %v298
        %v360 = vpack.c.bf16 %v301, %v300
        %v361 = vpack.c.bf16 %v303, %v302
        %v362 = vpack.c.bf16 %v305, %v304
        %v363 = vpack.c.bf16 %v307, %v306
        %v364 = vpack.c.bf16 %v309, %v308
        %v365 = vpack.c.bf16 %v311, %v310
        %v366 = vpack.c.bf16 %v313, %v312
        %v367 = vpack.c.bf16 %v315, %v314
        %v368 = vpack.c.bf16 %v317, %v316
        %v369 = vpack.c.bf16 %v319, %v318
        %v370 = vpack.c.bf16 %v321, %v320
        %v371 = vpack.c.bf16 %v323, %v322
        %v372 = vpack.c.bf16 %v325, %v324
        %v373 = vpack.c.bf16 %v327, %v326
        %v374 = vpack.c.bf16 %v329, %v328
        %v375 = vpack.c.bf16 %v331, %v330
        %v376 = vpack.c.bf16 %v333, %v332
        %v377 = vpack.c.bf16 %v335, %v334
        %v378 = vpack.c.bf16 %v337, %v336
        %v379 = vpack.c.bf16 %v339, %v338
        %v380 = vpack.c.bf16 %v341, %v340
        %v381 = vpack.c.bf16 %v343, %v342
        %v382 = vpack.c.bf16 %v345, %v344
        %v383 = vpack.c.bf16 %v347, %v346
        %v384 = vpack.c.bf16 %v349, %v348
        %v385 = vpack.c.bf16 %v351, %v350
        %v386 = vpack.c.bf16 %v353, %v352
        %v387 = vpack.c.bf16 %v355, %v354
        %v388 = vld [vmem:[%s2] sm:$0xf]
        %v389 = vld [vmem:[%s2 + $0x4] sm:$0xf]
        %v390 = vld [vmem:[%s5] sm:$0x1]
        %v391 = vperm.slane %v390, 0
        %v394 = vunpack.c.l.b16 %v388
        %v395 = vunpack.c.l.b16 %v389
        %v396 = vpack.c.b16 %v395, %v394
        %vm398 = vcmask 130048
        %v400 = vsel %vm398, %v356, 0
        %v403 = vsel %vm398, %v357, 0
        %v406 = vsel %vm398, %v358, 0
        %v409 = vsel %vm398, %v359, 0
        %v412 = vsel %vm398, %v360, 0
        %v415 = vsel %vm398, %v361, 0
        %v418 = vsel %vm398, %v362, 0
        %v421 = vsel %vm398, %v363, 0
        %v424 = vsel %vm398, %v364, 0
        %v427 = vsel %vm398, %v365, 0
        %v430 = vsel %vm398, %v366, 0
        %v433 = vsel %vm398, %v367, 0
        %v436 = vsel %vm398, %v368, 0
        %v439 = vsel %vm398, %v369, 0
        %v442 = vsel %vm398, %v370, 0
        %v445 = vsel %vm398, %v371, 0
        %v448 = vsel %vm398, %v372, 0
        %v451 = vsel %vm398, %v373, 0
        %v454 = vsel %vm398, %v374, 0
        %v457 = vsel %vm398, %v375, 0
        %v460 = vsel %vm398, %v376, 0
        %v463 = vsel %vm398, %v377, 0
        %v466 = vsel %vm398, %v378, 0
        %v469 = vsel %vm398, %v379, 0
        %v472 = vsel %vm398, %v380, 0
        %v475 = vsel %vm398, %v381, 0
        %v478 = vsel %vm398, %v382, 0
        %v481 = vsel %vm398, %v383, 0
        %v484 = vsel %vm398, %v384, 0
        %v487 = vsel %vm398, %v385, 0
        %v490 = vsel %vm398, %v386, 0
        %v493 = vsel %vm398, %v387, 0
        %495 = vmatpush.bf16.msra.mxu0 0
        %496 = vmatpush.bf16.msra.mxu0 0
        %497 = vmatpush.bf16.msra.mxu0 0
        %498 = vmatpush.bf16.msra.mxu0 0
        %499 = vmatpush.bf16.msra.mxu0 0
        %500 = vmatpush.bf16.msra.mxu0 0
        %501 = vmatpush.bf16.msra.mxu0 0
        %502 = vmatpush.bf16.msra.mxu0 %v396
        %503 = vmatmul.bf16.gmra.mxu0 %v400
        %v504 = vpop.f32.mrf.mxu0
        %v505 = vadd.f32 %v391, %v504
        %v506 = vpop.f32.mrf.mxu0
        %v507 = vadd.f32 %v391, %v506
        %508 = vmatmul.bf16.gmra.mxu0 %v403
        %v509 = vpop.f32.mrf.mxu0
        %v510 = vadd.f32 %v391, %v509
        %v511 = vpop.f32.mrf.mxu0
        %v512 = vadd.f32 %v391, %v511
        %513 = vmatmul.bf16.gmra.mxu0 %v406
        %v514 = vpop.f32.mrf.mxu0
        %v515 = vadd.f32 %v391, %v514
        %v516 = vpop.f32.mrf.mxu0
        %v517 = vadd.f32 %v391, %v516
        %518 = vmatmul.bf16.gmra.mxu0 %v409
        %v519 = vpop.f32.mrf.mxu0
        %v520 = vadd.f32 %v391, %v519
        %v521 = vpop.f32.mrf.mxu0
        %v522 = vadd.f32 %v391, %v521
        %523 = vmatmul.bf16.gmra.mxu0 %v412
        %v524 = vpop.f32.mrf.mxu0
        %v525 = vadd.f32 %v391, %v524
        %v526 = vpop.f32.mrf.mxu0
        %v527 = vadd.f32 %v391, %v526
        %528 = vmatmul.bf16.gmra.mxu0 %v415
        %v529 = vpop.f32.mrf.mxu0
        %v530 = vadd.f32 %v391, %v529
        %v531 = vpop.f32.mrf.mxu0
        %v532 = vadd.f32 %v391, %v531
        %533 = vmatmul.bf16.gmra.mxu0 %v418
        %v534 = vpop.f32.mrf.mxu0
        %v535 = vadd.f32 %v391, %v534
        %v536 = vpop.f32.mrf.mxu0
        %v537 = vadd.f32 %v391, %v536
        %538 = vmatmul.bf16.gmra.mxu0 %v421
        %v539 = vpop.f32.mrf.mxu0
        %v540 = vadd.f32 %v391, %v539
        %v541 = vpop.f32.mrf.mxu0
        %v542 = vadd.f32 %v391, %v541
        %543 = vmatmul.bf16.gmra.mxu0 %v424
        %v544 = vpop.f32.mrf.mxu0
        %v545 = vadd.f32 %v391, %v544
        %v546 = vpop.f32.mrf.mxu0
        %v547 = vadd.f32 %v391, %v546
        %548 = vmatmul.bf16.gmra.mxu0 %v427
        %v549 = vpop.f32.mrf.mxu0
        %v550 = vadd.f32 %v391, %v549
        %v551 = vpop.f32.mrf.mxu0
        %v552 = vadd.f32 %v391, %v551
        %553 = vmatmul.bf16.gmra.mxu0 %v430
        %v554 = vpop.f32.mrf.mxu0
        %v555 = vadd.f32 %v391, %v554
        %v556 = vpop.f32.mrf.mxu0
        %v557 = vadd.f32 %v391, %v556
        %558 = vmatmul.bf16.gmra.mxu0 %v433
        %v559 = vpop.f32.mrf.mxu0
        %v560 = vadd.f32 %v391, %v559
        %v561 = vpop.f32.mrf.mxu0
        %v562 = vadd.f32 %v391, %v561
        %563 = vmatmul.bf16.gmra.mxu0 %v436
        %v564 = vpop.f32.mrf.mxu0
        %v565 = vadd.f32 %v391, %v564
        %v566 = vpop.f32.mrf.mxu0
        %v567 = vadd.f32 %v391, %v566
        %568 = vmatmul.bf16.gmra.mxu0 %v439
        %v569 = vpop.f32.mrf.mxu0
        %v570 = vadd.f32 %v391, %v569
        %v571 = vpop.f32.mrf.mxu0
        %v572 = vadd.f32 %v391, %v571
        %573 = vmatmul.bf16.gmra.mxu0 %v442
        %v574 = vpop.f32.mrf.mxu0
        %v575 = vadd.f32 %v391, %v574
        %v576 = vpop.f32.mrf.mxu0
        %v577 = vadd.f32 %v391, %v576
        %578 = vmatmul.bf16.gmra.mxu0 %v445
        %v579 = vpop.f32.mrf.mxu0
        %v580 = vadd.f32 %v391, %v579
        %v581 = vpop.f32.mrf.mxu0
        %v582 = vadd.f32 %v391, %v581
        %583 = vmatmul.bf16.gmra.mxu0 %v448
        %v584 = vpop.f32.mrf.mxu0
        %v585 = vadd.f32 %v391, %v584
        %v586 = vpop.f32.mrf.mxu0
        %v587 = vadd.f32 %v391, %v586
        %588 = vmatmul.bf16.gmra.mxu0 %v451
        %v589 = vpop.f32.mrf.mxu0
        %v590 = vadd.f32 %v391, %v589
        %v591 = vpop.f32.mrf.mxu0
        %v592 = vadd.f32 %v391, %v591
        %593 = vmatmul.bf16.gmra.mxu0 %v454
        %v594 = vpop.f32.mrf.mxu0
        %v595 = vadd.f32 %v391, %v594
        %v596 = vpop.f32.mrf.mxu0
        %v597 = vadd.f32 %v391, %v596
        %598 = vmatmul.bf16.gmra.mxu0 %v457
        %v599 = vpop.f32.mrf.mxu0
        %v600 = vadd.f32 %v391, %v599
        %v601 = vpop.f32.mrf.mxu0
        %v602 = vadd.f32 %v391, %v601
        %603 = vmatmul.bf16.gmra.mxu0 %v460
        %v604 = vpop.f32.mrf.mxu0
        %v605 = vadd.f32 %v391, %v604
        %v606 = vpop.f32.mrf.mxu0
        %v607 = vadd.f32 %v391, %v606
        %608 = vmatmul.bf16.gmra.mxu0 %v463
        %v609 = vpop.f32.mrf.mxu0
        %v610 = vadd.f32 %v391, %v609
        %v611 = vpop.f32.mrf.mxu0
        %v612 = vadd.f32 %v391, %v611
        %613 = vmatmul.bf16.gmra.mxu0 %v466
        %v614 = vpop.f32.mrf.mxu0
        %v615 = vadd.f32 %v391, %v614
        %v616 = vpop.f32.mrf.mxu0
        %v617 = vadd.f32 %v391, %v616
        %618 = vmatmul.bf16.gmra.mxu0 %v469
        %v619 = vpop.f32.mrf.mxu0
        %v620 = vadd.f32 %v391, %v619
        %v621 = vpop.f32.mrf.mxu0
        %v622 = vadd.f32 %v391, %v621
        %623 = vmatmul.bf16.gmra.mxu0 %v472
        %v624 = vpop.f32.mrf.mxu0
        %v625 = vadd.f32 %v391, %v624
        %v626 = vpop.f32.mrf.mxu0
        %v627 = vadd.f32 %v391, %v626
        %628 = vmatmul.bf16.gmra.mxu0 %v475
        %v629 = vpop.f32.mrf.mxu0
        %v630 = vadd.f32 %v391, %v629
        %v631 = vpop.f32.mrf.mxu0
        %v632 = vadd.f32 %v391, %v631
        %633 = vmatmul.bf16.gmra.mxu0 %v478
        %v634 = vpop.f32.mrf.mxu0
        %v635 = vadd.f32 %v391, %v634
        %v636 = vpop.f32.mrf.mxu0
        %v637 = vadd.f32 %v391, %v636
        %638 = vmatmul.bf16.gmra.mxu0 %v481
        %v639 = vpop.f32.mrf.mxu0
        %v640 = vadd.f32 %v391, %v639
        %v641 = vpop.f32.mrf.mxu0
        %v642 = vadd.f32 %v391, %v641
        %643 = vmatmul.bf16.gmra.mxu0 %v484
        %v644 = vpop.f32.mrf.mxu0
        %v645 = vadd.f32 %v391, %v644
        %v646 = vpop.f32.mrf.mxu0
        %v647 = vadd.f32 %v391, %v646
        %648 = vmatmul.bf16.gmra.mxu0 %v487
        %v649 = vpop.f32.mrf.mxu0
        %v650 = vadd.f32 %v391, %v649
        %v651 = vpop.f32.mrf.mxu0
        %v652 = vadd.f32 %v391, %v651
        %653 = vmatmul.bf16.gmra.mxu0 %v490
        %v654 = vpop.f32.mrf.mxu0
        %v655 = vadd.f32 %v391, %v654
        %v656 = vpop.f32.mrf.mxu0
        %v657 = vadd.f32 %v391, %v656
        %658 = vmatmul.bf16.gmra.mxu0 %v493
        %v659 = vpop.f32.mrf.mxu0
        %v660 = vadd.f32 %v391, %v659
        %v661 = vpop.f32.mrf.mxu0
        %v662 = vadd.f32 %v391, %v661
        %663 = vdwg.mxu0
        %v664 = vmax.f32 %v505, 0.0
        %v665 = vmax.f32 %v507, 0.0
        %v666 = vmax.f32 %v510, 0.0
        %v667 = vmax.f32 %v512, 0.0
        %v668 = vmax.f32 %v515, 0.0
        %v669 = vmax.f32 %v517, 0.0
        %v670 = vmax.f32 %v520, 0.0
        %v671 = vmax.f32 %v522, 0.0
        %v672 = vmax.f32 %v525, 0.0
        %v673 = vmax.f32 %v527, 0.0
        %v674 = vmax.f32 %v530, 0.0
        %v675 = vmax.f32 %v532, 0.0
        %v676 = vmax.f32 %v535, 0.0
        %v677 = vmax.f32 %v537, 0.0
        %v678 = vmax.f32 %v540, 0.0
        %v679 = vmax.f32 %v542, 0.0
        %v680 = vmax.f32 %v545, 0.0
        %v681 = vmax.f32 %v547, 0.0
        %v682 = vmax.f32 %v550, 0.0
        %v683 = vmax.f32 %v552, 0.0
        %v684 = vmax.f32 %v555, 0.0
        %v685 = vmax.f32 %v557, 0.0
        %v686 = vmax.f32 %v560, 0.0
        %v687 = vmax.f32 %v562, 0.0
        %v688 = vmax.f32 %v565, 0.0
        %v689 = vmax.f32 %v567, 0.0
        %v690 = vmax.f32 %v570, 0.0
        %v691 = vmax.f32 %v572, 0.0
        %v692 = vmax.f32 %v575, 0.0
        %v693 = vmax.f32 %v577, 0.0
        %v694 = vmax.f32 %v580, 0.0
        %v695 = vmax.f32 %v582, 0.0
        %v696 = vmax.f32 %v585, 0.0
        %v697 = vmax.f32 %v587, 0.0
        %v698 = vmax.f32 %v590, 0.0
        %v699 = vmax.f32 %v592, 0.0
        %v700 = vmax.f32 %v595, 0.0
        %v701 = vmax.f32 %v597, 0.0
        %v702 = vmax.f32 %v600, 0.0
        %v703 = vmax.f32 %v602, 0.0
        %v704 = vmax.f32 %v605, 0.0
        %v705 = vmax.f32 %v607, 0.0
        %v706 = vmax.f32 %v610, 0.0
        %v707 = vmax.f32 %v612, 0.0
        %v708 = vmax.f32 %v615, 0.0
        %v709 = vmax.f32 %v617, 0.0
        %v710 = vmax.f32 %v620, 0.0
        %v711 = vmax.f32 %v622, 0.0
        %v712 = vmax.f32 %v625, 0.0
        %v713 = vmax.f32 %v627, 0.0
        %v714 = vmax.f32 %v630, 0.0
        %v715 = vmax.f32 %v632, 0.0
        %v716 = vmax.f32 %v635, 0.0
        %v717 = vmax.f32 %v637, 0.0
        %v718 = vmax.f32 %v640, 0.0
        %v719 = vmax.f32 %v642, 0.0
        %v720 = vmax.f32 %v645, 0.0
        %v721 = vmax.f32 %v647, 0.0
        %v722 = vmax.f32 %v650, 0.0
        %v723 = vmax.f32 %v652, 0.0
        %v724 = vmax.f32 %v655, 0.0
        %v725 = vmax.f32 %v657, 0.0
        %v726 = vmax.f32 %v660, 0.0
        %v727 = vmax.f32 %v662, 0.0
        %v728 = vpack.c.bf16 %v665, %v664
        %v729 = vpack.c.bf16 %v667, %v666
        %v730 = vpack.c.bf16 %v669, %v668
        %v731 = vpack.c.bf16 %v671, %v670
        %v732 = vpack.c.bf16 %v673, %v672
        %v733 = vpack.c.bf16 %v675, %v674
        %v734 = vpack.c.bf16 %v677, %v676
        %v735 = vpack.c.bf16 %v679, %v678
        %v736 = vpack.c.bf16 %v681, %v680
        %v737 = vpack.c.bf16 %v683, %v682
        %v738 = vpack.c.bf16 %v685, %v684
        %v739 = vpack.c.bf16 %v687, %v686
        %v740 = vpack.c.bf16 %v689, %v688
        %v741 = vpack.c.bf16 %v691, %v690
        %v742 = vpack.c.bf16 %v693, %v692
        %v743 = vpack.c.bf16 %v695, %v694
        %v744 = vpack.c.bf16 %v697, %v696
        %v745 = vpack.c.bf16 %v699, %v698
        %v746 = vpack.c.bf16 %v701, %v700
        %v747 = vpack.c.bf16 %v703, %v702
        %v748 = vpack.c.bf16 %v705, %v704
        %v749 = vpack.c.bf16 %v707, %v706
        %v750 = vpack.c.bf16 %v709, %v708
        %v751 = vpack.c.bf16 %v711, %v710
        %v752 = vpack.c.bf16 %v713, %v712
        %v753 = vpack.c.bf16 %v715, %v714
        %v754 = vpack.c.bf16 %v717, %v716
        %v755 = vpack.c.bf16 %v719, %v718
        %v756 = vpack.c.bf16 %v721, %v720
        %v757 = vpack.c.bf16 %v723, %v722
        %v758 = vpack.c.bf16 %v725, %v724
        %v759 = vpack.c.bf16 %v727, %v726
        %v760 = vld [vmem:[%s3] sm:$0xf]
        %v761 = vld [vmem:[%s3 + $0x4] sm:$0xf]
        %v762 = vld [vmem:[%s3 + $0x8] sm:$0xf]
        %v763 = vld [vmem:[%s3 + $0xc] sm:$0xf]
        %v764 = vld [vmem:[%s3 + $0x10] sm:$0xf]
        %v765 = vld [vmem:[%s3 + $0x14] sm:$0xf]
        %v766 = vld [vmem:[%s3 + $0x18] sm:$0xf]
        %v767 = vld [vmem:[%s3 + $0x1c] sm:$0xf]
        %v768 = vld [vmem:[%s3 + $0x20] sm:$0xf]
        %v769 = vld [vmem:[%s3 + $0x24] sm:$0xf]
        %v770 = vld [vmem:[%s3 + $0x28] sm:$0xf]
        %v771 = vld [vmem:[%s3 + $0x2c] sm:$0xf]
        %v772 = vld [vmem:[%s3 + $0x30] sm:$0xf]
        %v773 = vld [vmem:[%s3 + $0x34] sm:$0xf]
        %v774 = vld [vmem:[%s3 + $0x38] sm:$0xf]
        %v775 = vld [vmem:[%s3 + $0x3c] sm:$0xf]
        %v776 = vld [vmem:[%s5 + $0x1] sm:$0x1]
        %v777 = vperm.slane %v776, 0
        %v794 = vunpack.c.l.b16 %v760
        %v795 = vunpack.c.l.b16 %v761
        %v796 = vunpack.c.l.b16 %v762
        %v797 = vunpack.c.l.b16 %v763
        %v798 = vunpack.c.l.b16 %v764
        %v799 = vunpack.c.l.b16 %v765
        %v800 = vunpack.c.l.b16 %v766
        %v801 = vunpack.c.l.b16 %v767
        %v802 = vunpack.c.l.b16 %v768
        %v803 = vunpack.c.l.b16 %v769
        %v804 = vunpack.c.l.b16 %v770
        %v805 = vunpack.c.l.b16 %v771
        %v806 = vunpack.c.l.b16 %v772
        %v807 = vunpack.c.l.b16 %v773
        %v808 = vunpack.c.l.b16 %v774
        %v809 = vunpack.c.l.b16 %v775
        %v810 = vpack.c.b16 %v795, %v794
        %v811 = vpack.c.b16 %v797, %v796
        %v812 = vpack.c.b16 %v799, %v798
        %v813 = vpack.c.b16 %v801, %v800
        %v814 = vpack.c.b16 %v803, %v802
        %v815 = vpack.c.b16 %v805, %v804
        %v816 = vpack.c.b16 %v807, %v806
        %v817 = vpack.c.b16 %v809, %v808
        %826 = vmatpush.bf16.msra.mxu0 %v817
        %827 = vmatpush.bf16.msra.mxu0 %v816
        %828 = vmatpush.bf16.msra.mxu0 %v815
        %829 = vmatpush.bf16.msra.mxu0 %v814
        %830 = vmatpush.bf16.msra.mxu0 %v813
        %831 = vmatpush.bf16.msra.mxu0 %v812
        %832 = vmatpush.bf16.msra.mxu0 %v811
        %833 = vmatpush.bf16.msra.mxu0 %v810
        %834 = vmatmul.bf16.gmra.mxu0 %v728
        %v835 = vpop.f32.mrf.mxu0
        %v836 = vadd.f32 %v777, %v835
        %v837 = vpop.f32.mrf.mxu0
        %v838 = vadd.f32 %v777, %v837
        %839 = vmatmul.bf16.gmra.mxu0 %v729
        %v840 = vpop.f32.mrf.mxu0
        %v841 = vadd.f32 %v777, %v840
        %v842 = vpop.f32.mrf.mxu0
        %v843 = vadd.f32 %v777, %v842
        %844 = vmatmul.bf16.gmra.mxu0 %v730
        %v845 = vpop.f32.mrf.mxu0
        %v846 = vadd.f32 %v777, %v845
        %v847 = vpop.f32.mrf.mxu0
        %v848 = vadd.f32 %v777, %v847
        %849 = vmatmul.bf16.gmra.mxu0 %v731
        %v850 = vpop.f32.mrf.mxu0
        %v851 = vadd.f32 %v777, %v850
        %v852 = vpop.f32.mrf.mxu0
        %v853 = vadd.f32 %v777, %v852
        %854 = vmatmul.bf16.gmra.mxu0 %v732
        %v855 = vpop.f32.mrf.mxu0
        %v856 = vadd.f32 %v777, %v855
        %v857 = vpop.f32.mrf.mxu0
        %v858 = vadd.f32 %v777, %v857
        %859 = vmatmul.bf16.gmra.mxu0 %v733
        %v860 = vpop.f32.mrf.mxu0
        %v861 = vadd.f32 %v777, %v860
        %v862 = vpop.f32.mrf.mxu0
        %v863 = vadd.f32 %v777, %v862
        %864 = vmatmul.bf16.gmra.mxu0 %v734
        %v865 = vpop.f32.mrf.mxu0
        %v866 = vadd.f32 %v777, %v865
        %v867 = vpop.f32.mrf.mxu0
        %v868 = vadd.f32 %v777, %v867
        %869 = vmatmul.bf16.gmra.mxu0 %v735
        %v870 = vpop.f32.mrf.mxu0
        %v871 = vadd.f32 %v777, %v870
        %v872 = vpop.f32.mrf.mxu0
        %v873 = vadd.f32 %v777, %v872
        %874 = vmatmul.bf16.gmra.mxu0 %v736
        %v875 = vpop.f32.mrf.mxu0
        %v876 = vadd.f32 %v777, %v875
        %v877 = vpop.f32.mrf.mxu0
        %v878 = vadd.f32 %v777, %v877
        %879 = vmatmul.bf16.gmra.mxu0 %v737
        %v880 = vpop.f32.mrf.mxu0
        %v881 = vadd.f32 %v777, %v880
        %v882 = vpop.f32.mrf.mxu0
        %v883 = vadd.f32 %v777, %v882
        %884 = vmatmul.bf16.gmra.mxu0 %v738
        %v885 = vpop.f32.mrf.mxu0
        %v886 = vadd.f32 %v777, %v885
        %v887 = vpop.f32.mrf.mxu0
        %v888 = vadd.f32 %v777, %v887
        %889 = vmatmul.bf16.gmra.mxu0 %v739
        %v890 = vpop.f32.mrf.mxu0
        %v891 = vadd.f32 %v777, %v890
        %v892 = vpop.f32.mrf.mxu0
        %v893 = vadd.f32 %v777, %v892
        %894 = vmatmul.bf16.gmra.mxu0 %v740
        %v895 = vpop.f32.mrf.mxu0
        %v896 = vadd.f32 %v777, %v895
        %v897 = vpop.f32.mrf.mxu0
        %v898 = vadd.f32 %v777, %v897
        %899 = vmatmul.bf16.gmra.mxu0 %v741
        %v900 = vpop.f32.mrf.mxu0
        %v901 = vadd.f32 %v777, %v900
        %v902 = vpop.f32.mrf.mxu0
        %v903 = vadd.f32 %v777, %v902
        %904 = vmatmul.bf16.gmra.mxu0 %v742
        %v905 = vpop.f32.mrf.mxu0
        %v906 = vadd.f32 %v777, %v905
        %v907 = vpop.f32.mrf.mxu0
        %v908 = vadd.f32 %v777, %v907
        %909 = vmatmul.bf16.gmra.mxu0 %v743
        %v910 = vpop.f32.mrf.mxu0
        %v911 = vadd.f32 %v777, %v910
        %v912 = vpop.f32.mrf.mxu0
        %v913 = vadd.f32 %v777, %v912
        %914 = vmatmul.bf16.gmra.mxu0 %v744
        %v915 = vpop.f32.mrf.mxu0
        %v916 = vadd.f32 %v777, %v915
        %v917 = vpop.f32.mrf.mxu0
        %v918 = vadd.f32 %v777, %v917
        %919 = vmatmul.bf16.gmra.mxu0 %v745
        %v920 = vpop.f32.mrf.mxu0
        %v921 = vadd.f32 %v777, %v920
        %v922 = vpop.f32.mrf.mxu0
        %v923 = vadd.f32 %v777, %v922
        %924 = vmatmul.bf16.gmra.mxu0 %v746
        %v925 = vpop.f32.mrf.mxu0
        %v926 = vadd.f32 %v777, %v925
        %v927 = vpop.f32.mrf.mxu0
        %v928 = vadd.f32 %v777, %v927
        %929 = vmatmul.bf16.gmra.mxu0 %v747
        %v930 = vpop.f32.mrf.mxu0
        %v931 = vadd.f32 %v777, %v930
        %v932 = vpop.f32.mrf.mxu0
        %v933 = vadd.f32 %v777, %v932
        %934 = vmatmul.bf16.gmra.mxu0 %v748
        %v935 = vpop.f32.mrf.mxu0
        %v936 = vadd.f32 %v777, %v935
        %v937 = vpop.f32.mrf.mxu0
        %v938 = vadd.f32 %v777, %v937
        %939 = vmatmul.bf16.gmra.mxu0 %v749
        %v940 = vpop.f32.mrf.mxu0
        %v941 = vadd.f32 %v777, %v940
        %v942 = vpop.f32.mrf.mxu0
        %v943 = vadd.f32 %v777, %v942
        %944 = vmatmul.bf16.gmra.mxu0 %v750
        %v945 = vpop.f32.mrf.mxu0
        %v946 = vadd.f32 %v777, %v945
        %v947 = vpop.f32.mrf.mxu0
        %v948 = vadd.f32 %v777, %v947
        %949 = vmatmul.bf16.gmra.mxu0 %v751
        %v950 = vpop.f32.mrf.mxu0
        %v951 = vadd.f32 %v777, %v950
        %v952 = vpop.f32.mrf.mxu0
        %v953 = vadd.f32 %v777, %v952
        %954 = vmatmul.bf16.gmra.mxu0 %v752
        %v955 = vpop.f32.mrf.mxu0
        %v956 = vadd.f32 %v777, %v955
        %v957 = vpop.f32.mrf.mxu0
        %v958 = vadd.f32 %v777, %v957
        %959 = vmatmul.bf16.gmra.mxu0 %v753
        %v960 = vpop.f32.mrf.mxu0
        %v961 = vadd.f32 %v777, %v960
        %v962 = vpop.f32.mrf.mxu0
        %v963 = vadd.f32 %v777, %v962
        %964 = vmatmul.bf16.gmra.mxu0 %v754
        %v965 = vpop.f32.mrf.mxu0
        %v966 = vadd.f32 %v777, %v965
        %v967 = vpop.f32.mrf.mxu0
        %v968 = vadd.f32 %v777, %v967
        %969 = vmatmul.bf16.gmra.mxu0 %v755
        %v970 = vpop.f32.mrf.mxu0
        %v971 = vadd.f32 %v777, %v970
        %v972 = vpop.f32.mrf.mxu0
        %v973 = vadd.f32 %v777, %v972
        %974 = vmatmul.bf16.gmra.mxu0 %v756
        %v975 = vpop.f32.mrf.mxu0
        %v976 = vadd.f32 %v777, %v975
        %v977 = vpop.f32.mrf.mxu0
        %v978 = vadd.f32 %v777, %v977
        %979 = vmatmul.bf16.gmra.mxu0 %v757
        %v980 = vpop.f32.mrf.mxu0
        %v981 = vadd.f32 %v777, %v980
        %v982 = vpop.f32.mrf.mxu0
        %v983 = vadd.f32 %v777, %v982
        %984 = vmatmul.bf16.gmra.mxu0 %v758
        %v985 = vpop.f32.mrf.mxu0
        %v986 = vadd.f32 %v777, %v985
        %v987 = vpop.f32.mrf.mxu0
        %v988 = vadd.f32 %v777, %v987
        %989 = vmatmul.bf16.gmra.mxu0 %v759
        %v990 = vpop.f32.mrf.mxu0
        %v991 = vadd.f32 %v777, %v990
        %v992 = vpop.f32.mrf.mxu0
        %v993 = vadd.f32 %v777, %v992
        %994 = vdwg.mxu0
        %v995 = vmax.f32 %v836, 0.0
        %v996 = vmax.f32 %v838, 0.0
        %v997 = vmax.f32 %v841, 0.0
        %v998 = vmax.f32 %v843, 0.0
        %v999 = vmax.f32 %v846, 0.0
        %v1000 = vmax.f32 %v848, 0.0
        %v1001 = vmax.f32 %v851, 0.0
        %v1002 = vmax.f32 %v853, 0.0
        %v1003 = vmax.f32 %v856, 0.0
        %v1004 = vmax.f32 %v858, 0.0
        %v1005 = vmax.f32 %v861, 0.0
        %v1006 = vmax.f32 %v863, 0.0
        %v1007 = vmax.f32 %v866, 0.0
        %v1008 = vmax.f32 %v868, 0.0
        %v1009 = vmax.f32 %v871, 0.0
        %v1010 = vmax.f32 %v873, 0.0
        %v1011 = vmax.f32 %v876, 0.0
        %v1012 = vmax.f32 %v878, 0.0
        %v1013 = vmax.f32 %v881, 0.0
        %v1014 = vmax.f32 %v883, 0.0
        %v1015 = vmax.f32 %v886, 0.0
        %v1016 = vmax.f32 %v888, 0.0
        %v1017 = vmax.f32 %v891, 0.0
        %v1018 = vmax.f32 %v893, 0.0
        %v1019 = vmax.f32 %v896, 0.0
        %v1020 = vmax.f32 %v898, 0.0
        %v1021 = vmax.f32 %v901, 0.0
        %v1022 = vmax.f32 %v903, 0.0
        %v1023 = vmax.f32 %v906, 0.0
        %v1024 = vmax.f32 %v908, 0.0
        %v1025 = vmax.f32 %v911, 0.0
        %v1026 = vmax.f32 %v913, 0.0
        %v1027 = vmax.f32 %v916, 0.0
        %v1028 = vmax.f32 %v918, 0.0
        %v1029 = vmax.f32 %v921, 0.0
        %v1030 = vmax.f32 %v923, 0.0
        %v1031 = vmax.f32 %v926, 0.0
        %v1032 = vmax.f32 %v928, 0.0
        %v1033 = vmax.f32 %v931, 0.0
        %v1034 = vmax.f32 %v933, 0.0
        %v1035 = vmax.f32 %v936, 0.0
        %v1036 = vmax.f32 %v938, 0.0
        %v1037 = vmax.f32 %v941, 0.0
        %v1038 = vmax.f32 %v943, 0.0
        %v1039 = vmax.f32 %v946, 0.0
        %v1040 = vmax.f32 %v948, 0.0
        %v1041 = vmax.f32 %v951, 0.0
        %v1042 = vmax.f32 %v953, 0.0
        %v1043 = vmax.f32 %v956, 0.0
        %v1044 = vmax.f32 %v958, 0.0
        %v1045 = vmax.f32 %v961, 0.0
        %v1046 = vmax.f32 %v963, 0.0
        %v1047 = vmax.f32 %v966, 0.0
        %v1048 = vmax.f32 %v968, 0.0
        %v1049 = vmax.f32 %v971, 0.0
        %v1050 = vmax.f32 %v973, 0.0
        %v1051 = vmax.f32 %v976, 0.0
        %v1052 = vmax.f32 %v978, 0.0
        %v1053 = vmax.f32 %v981, 0.0
        %v1054 = vmax.f32 %v983, 0.0
        %v1055 = vmax.f32 %v986, 0.0
        %v1056 = vmax.f32 %v988, 0.0
        %v1057 = vmax.f32 %v991, 0.0
        %v1058 = vmax.f32 %v993, 0.0
        %v1059 = vlaneseq
        %v1060 = vshrl.u32 %v1059, 7
        %v1061 = vld [vmem:[%s278] sm:$0xf]
        %v1062 = vperm.slane %v1061, 0
        %v1063 = vperm.slane %v1061, 1
        %v1064 = vperm.slane %v1061, 2
        %v1065 = vperm.slane %v1061, 3
        %vm1066 = vcmp.eq.s32.totalorder %v1062, %v1060
        %vm1067 = vcmp.eq.s32.totalorder %v1063, %v1060
        %vm1068 = vcmp.eq.s32.totalorder %v1064, %v1060
        %vm1069 = vcmp.eq.s32.totalorder %v1065, %v1060
        %v1070 = vsel %vm1066, 1, 0
        %v1071 = vsel %vm1067, 1, 0
        %v1072 = vsel %vm1068, 1, 0
        %v1073 = vsel %vm1069, 1, 0
        %v1074 = vcvt.s32.f32 %v1070
        %v1075 = vcvt.s32.f32 %v1071
        %v1076 = vcvt.s32.f32 %v1072
        %v1077 = vcvt.s32.f32 %v1073
        %v1078 = vpack.c.bf16 %v1074, %v1074
        %v1079 = vpack.c.bf16 %v1075, %v1075
        %v1080 = vpack.c.bf16 %v1076, %v1076
        %v1081 = vpack.c.bf16 %v1077, %v1077
        %v1082 = vld [vmem:[#allocation2] sm:$0xff]
        %v1083 = vpack.c.bf16 %v996, %v995
        %v1084 = vpack.c.bf16 %v998, %v997
        %v1085 = vpack.c.bf16 %v1000, %v999
        %v1086 = vpack.c.bf16 %v1002, %v1001
        %v1087 = vpack.c.bf16 %v1004, %v1003
        %v1088 = vpack.c.bf16 %v1006, %v1005
        %v1089 = vpack.c.bf16 %v1008, %v1007
        %v1090 = vpack.c.bf16 %v1010, %v1009
        %v1091 = vpack.c.bf16 %v1012, %v1011
        %v1092 = vpack.c.bf16 %v1014, %v1013
        %v1093 = vpack.c.bf16 %v1016, %v1015
        %v1094 = vpack.c.bf16 %v1018, %v1017
        %v1095 = vpack.c.bf16 %v1020, %v1019
        %v1096 = vpack.c.bf16 %v1022, %v1021
        %v1097 = vpack.c.bf16 %v1024, %v1023
        %v1098 = vpack.c.bf16 %v1026, %v1025
        %v1099 = vpack.c.bf16 %v1028, %v1027
        %v1100 = vpack.c.bf16 %v1030, %v1029
        %v1101 = vpack.c.bf16 %v1032, %v1031
        %v1102 = vpack.c.bf16 %v1034, %v1033
        %v1103 = vpack.c.bf16 %v1036, %v1035
        %v1104 = vpack.c.bf16 %v1038, %v1037
        %v1105 = vpack.c.bf16 %v1040, %v1039
        %v1106 = vpack.c.bf16 %v1042, %v1041
        %v1107 = vpack.c.bf16 %v1044, %v1043
        %v1108 = vpack.c.bf16 %v1046, %v1045
        %v1109 = vpack.c.bf16 %v1048, %v1047
        %v1110 = vpack.c.bf16 %v1050, %v1049
        %v1111 = vpack.c.bf16 %v1052, %v1051
        %v1112 = vpack.c.bf16 %v1054, %v1053
        %v1113 = vpack.c.bf16 %v1056, %v1055
        %v1114 = vpack.c.bf16 %v1058, %v1057
        %1115 = vmatpush.bf16.msra.mxu0 %v1090
        %1116 = vmatpush.bf16.msra.mxu0 %v1089
        %1117 = vmatpush.bf16.msra.mxu0 %v1088
        %1118 = vmatpush.bf16.msra.mxu0 %v1087
        %1119 = vmatpush.bf16.msra.mxu0 %v1086
        %1120 = vmatpush.bf16.msra.mxu0 %v1085
        %1121 = vmatpush.bf16.msra.mxu0 %v1084
        %1122 = vmatpush.bf16.msra.mxu0 %v1083
        %1123 = vmatmul.bf16.gmra.mxu0 %v1078
        %v1124 = vpop.f32.mrf.mxu0
        %v1125 = vadd.f32 0.0, %v1124
        %v1126 = vpop.f32.mrf.mxu0
        %1127 = vdwg.mxu0
        %1128 = vmatpush.bf16.msra.mxu0 %v1098
        %1129 = vmatpush.bf16.msra.mxu0 %v1097
        %1130 = vmatpush.bf16.msra.mxu0 %v1096
        %1131 = vmatpush.bf16.msra.mxu0 %v1095
        %1132 = vmatpush.bf16.msra.mxu0 %v1094
        %1133 = vmatpush.bf16.msra.mxu0 %v1093
        %1134 = vmatpush.bf16.msra.mxu0 %v1092
        %1135 = vmatpush.bf16.msra.mxu0 %v1091
        %1136 = vmatmul.bf16.gmra.mxu0 %v1079
        %v1137 = vpop.f32.mrf.mxu0
        %v1138 = vadd.f32 %v1125, %v1137
        %v1139 = vpop.f32.mrf.mxu0
        %1140 = vdwg.mxu0
        %1141 = vmatpush.bf16.msra.mxu0 %v1106
        %1142 = vmatpush.bf16.msra.mxu0 %v1105
        %1143 = vmatpush.bf16.msra.mxu0 %v1104
        %1144 = vmatpush.bf16.msra.mxu0 %v1103
        %1145 = vmatpush.bf16.msra.mxu0 %v1102
        %1146 = vmatpush.bf16.msra.mxu0 %v1101
        %1147 = vmatpush.bf16.msra.mxu0 %v1100
        %1148 = vmatpush.bf16.msra.mxu0 %v1099
        %1149 = vmatmul.bf16.gmra.mxu0 %v1080
        %v1150 = vpop.f32.mrf.mxu0
        %v1151 = vadd.f32 %v1138, %v1150
        %v1152 = vpop.f32.mrf.mxu0
        %1153 = vdwg.mxu0
        %1154 = vmatpush.bf16.msra.mxu0 %v1114
        %1155 = vmatpush.bf16.msra.mxu0 %v1113
        %1156 = vmatpush.bf16.msra.mxu0 %v1112
        %1157 = vmatpush.bf16.msra.mxu0 %v1111
        %1158 = vmatpush.bf16.msra.mxu0 %v1110
        %1159 = vmatpush.bf16.msra.mxu0 %v1109
        %1160 = vmatpush.bf16.msra.mxu0 %v1108
        %1161 = vmatpush.bf16.msra.mxu0 %v1107
        %1162 = vmatmul.bf16.gmra.mxu0 %v1081
        %v1163 = vpop.f32.mrf.mxu0
        %v1164 = vadd.f32 %v1151, %v1163
        %v1165 = vpop.f32.mrf.mxu0
        %1166 = vdwg.mxu0
        %v1167 = vadd.f32 %v1082, %v1164
        %1168 = vst [vmem:[#allocation2] sm:$0xff] %v1167
        %p1169 = scmp.eq.s32.totalorder %s19, 1
        // Predicated region
        $region53: #{tpu_custom_call.1} parent=47 // pred_check
          %p1170 = pneg %p1169
        $region54: #{tpu_custom_call.1} parent=47 // pred_check_branch
          %1172 = sbr.rel (%p1170) target = $region56
        $region55: #{tpu_custom_call.1} parent=47 // pred_region
          %v1173 = vld [vmem:[#allocation2] sm:$0xff]
          %v1174 = vld [vmem:[%s6] sm:$0xff]
          %1176 = vset.pattern.permute.xlu0 0
          %1177 = vperm.xlu0 %1176, %v1174
          %v1178 = vpop.permute.xlu0 %1177
          %v1180 = vmul.f32 %v1173, %v1178
          %v1181 = vpack.c.bf16 %v1180, %v1180
          %v1182 = vld [vmem:[%s4] sm:$0xf]
          %v1183 = vld [vmem:[%s4 + $0x4] sm:$0xf]
          %v1184 = vld [vmem:[%s4 + $0x8] sm:$0xf]
          %v1185 = vld [vmem:[%s4 + $0xc] sm:$0xf]
          %v1186 = vld [vmem:[%s4 + $0x10] sm:$0xf]
          %v1187 = vld [vmem:[%s4 + $0x14] sm:$0xf]
          %v1188 = vld [vmem:[%s4 + $0x18] sm:$0xf]
          %v1189 = vld [vmem:[%s4 + $0x1c] sm:$0xf]
          %v1190 = vld [vmem:[%s4 + $0x20] sm:$0xf]
          %v1191 = vld [vmem:[%s4 + $0x24] sm:$0xf]
          %v1192 = vld [vmem:[%s4 + $0x28] sm:$0xf]
          %v1193 = vld [vmem:[%s4 + $0x2c] sm:$0xf]
          %v1194 = vld [vmem:[%s4 + $0x30] sm:$0xf]
          %v1195 = vld [vmem:[%s4 + $0x34] sm:$0xf]
          %v1196 = vld [vmem:[%s4 + $0x38] sm:$0xf]
          %v1197 = vld [vmem:[%s4 + $0x3c] sm:$0xf]
          %v1198 = vld [vmem:[%s5 + $0x2] sm:$0x1]
          %v1199 = vperm.slane %v1198, 0
          %v1216 = vunpack.c.l.b16 %v1182
          %v1217 = vunpack.c.l.b16 %v1183
          %v1218 = vunpack.c.l.b16 %v1184
          %v1219 = vunpack.c.l.b16 %v1185
          %v1220 = vunpack.c.l.b16 %v1186
          %v1221 = vunpack.c.l.b16 %v1187
          %v1222 = vunpack.c.l.b16 %v1188
          %v1223 = vunpack.c.l.b16 %v1189
          %v1224 = vunpack.c.l.b16 %v1190
          %v1225 = vunpack.c.l.b16 %v1191
          %v1226 = vunpack.c.l.b16 %v1192
          %v1227 = vunpack.c.l.b16 %v1193
          %v1228 = vunpack.c.l.b16 %v1194
          %v1229 = vunpack.c.l.b16 %v1195
          %v1230 = vunpack.c.l.b16 %v1196
          %v1231 = vunpack.c.l.b16 %v1197
          %v1232 = vpack.c.b16 %v1217, %v1216
          %v1233 = vpack.c.b16 %v1219, %v1218
          %v1234 = vpack.c.b16 %v1221, %v1220
          %v1235 = vpack.c.b16 %v1223, %v1222
          %v1236 = vpack.c.b16 %v1225, %v1224
          %v1237 = vpack.c.b16 %v1227, %v1226
          %v1238 = vpack.c.b16 %v1229, %v1228
          %v1239 = vpack.c.b16 %v1231, %v1230
          %1248 = vmatpush.bf16.msra.mxu0 %v1239
          %1249 = vmatpush.bf16.msra.mxu0 %v1238
          %1250 = vmatpush.bf16.msra.mxu0 %v1237
          %1251 = vmatpush.bf16.msra.mxu0 %v1236
          %1252 = vmatpush.bf16.msra.mxu0 %v1235
          %1253 = vmatpush.bf16.msra.mxu0 %v1234
          %1254 = vmatpush.bf16.msra.mxu0 %v1233
          %1255 = vmatpush.bf16.msra.mxu0 %v1232
          %1256 = vmatmul.bf16.gmra.mxu0 %v1181
          %v1257 = vpop.f32.mrf.mxu0
          %v1258 = vadd.f32 %v1199, %v1257
          %v1259 = vpop.f32.mrf.mxu0
          %1260 = vdwg.mxu0
          %v1261 = vlaneseq
          %v1262 = vand.u32 %v1261, 127
          %vm1263 = vcmp.lt.s32.totalorder %v1262, 8
          %v1264 = vsel %vm1263, %v1258, -1e+30
          %1265 = vmax.xlane.f32.xlu0 %v1264
          %v1266 = vpop.xlane.xlu0 %1265
          %v1267 = vsub.f32 %v1264, %v1266
          %v1268 = vmul.f32 %v1267, 1.442695
          %v1269 = vpow.pop %v1268
          %1270 = vadd.xlane.f32.xlu0 %v1269
          %v1271 = vpop.xlane.xlu0 %1270
          %v1272 = vlog2.pop %v1271
          %v1273 = vmul.f32 %v1272, 0.6931472
          %v1274 = vsub.f32 %v1267, %v1273
          %1275 = vst [vmem:[#allocation3] sm:$0xff] %v1274
        $region56: #{tpu_custom_call.1} parent=47 // pred_fallthru
          _
        // Predicated region
        $region57: #{tpu_custom_call.1} parent=47 // pred_check
          %p1276 = pneg %p189
        $region58: #{tpu_custom_call.1} parent=47 // pred_check_branch
          %1278 = sbr.rel (%p1276) target = $region60
        $region59: #{tpu_custom_call.1} parent=47 // pred_region
          %1280 = vsyncadd [#allocation4], 0
          %s1282 = sshll.u32 [#allocation3], 4
          %s1283 = int_to_ptr.vmem [resolvable:$true] %s1282
          %s1284 = sshll.u32 %s7, 4
          %s1285 = int_to_ptr.hbm [resolvable:$true] %s1284
          %1287 = dma.vmem_to_hbm [thread:$0]  %s1283, 128, %s1285, [#allocation4]
        $region60: #{tpu_custom_call.1} parent=47 // pred_fallthru
          _
        // Predicated region
        $region61: #{tpu_custom_call.1} parent=47 // pred_check
          %p1288 = pneg %p189
        $region62: #{tpu_custom_call.1} parent=47 // pred_check_branch
          %1290 = sbr.rel (%p1288) target = $region64
        $region63: #{tpu_custom_call.1} parent=47 // pred_region
          %1292 = dma.done [#allocation4], 128
        $region64: #{tpu_custom_call.1} parent=47 // pred_fallthru
          _
      $region48: #{tpu_custom_call.1} parent=5 // pred_fallthru
        _
      %p1293 = scmp.le.s32.totalorder 2, %s14
      // Predicated region
      $region65: #{tpu_custom_call.1} parent=5 // pred_check
        %p1294 = pneg %p1293
      $region66: #{tpu_custom_call.1} parent=5 // pred_check_branch
        %1296 = sbr.rel (%p1294) target = $region68
      $region67: #{tpu_custom_call.1} parent=5 // pred_region
        %s1297 = ssub.s32 %s14, 2
      $region68: #{tpu_custom_call.1} parent=5 // pred_fallthru
        _
    $region6: #{tpu_custom_call.1} parent=1 // loop_footer
      %s18 = sadd.s32 1, %s14
    $region7: #{tpu_custom_call.1} parent=1 // loop_footer_branch
      %13 = sbr.rel target = $region3
    $region8: #{tpu_custom_call.1} parent=1 // loop_exit
      _
    %1298 = vsyncpa [#allocation4], 1
    %s1299 = scalar_lea.sflag [#allocation4], 1
    %1300 = vsyncpa %s1299, 1

</llo_original>
